<compile_context>
chip_gen: v6e
topology: v6e:2x2x1
jax: 0.10.0
libtpu: 0.0.40
codegen_flags: <defaults>
</compile_context>

<pallas_src>
import functools

import numpy as np
import jax
import jax.numpy as jnp
from jax.experimental import pallas as pl
from jax.experimental.pallas import tpu as pltpu

try:  # prefer SciPy's Hungarian solve on the host if present
    from scipy.optimize import linear_sum_assignment as _scipy_lsa
except Exception:  # pragma: no cover
    _scipy_lsa = None


def _cost_kernel(coords_ref, gt_ref, prob_ref, labels_ref, c_ref, *,
                 cost_point_w, cost_class_w, num_classes):
    # coords_ref: (TN, 2)   gt_ref: (2, TT)   prob_ref: (TN, C)
    # labels_ref: (1, TT) int32               c_ref: (TN, TT)
    coords = coords_ref[...]
    gx = gt_ref[0:1, :]                       # (1, TT)
    gy = gt_ref[1:2, :]
    dx = coords[:, 0:1] - gx                  # (TN, TT) via broadcast (VPU)
    dy = coords[:, 1:2] - gy
    d2 = dx * dx + dy * dy                    # exact squared diff, no cancellation
    cost_point = jnp.sqrt(d2)                 # EUP sqrt

    # class gather expressed as (TN, C) @ (C, TT) with a one-hot built in VMEM
    labels = labels_ref[...]                  # (1, TT) int32
    iota = jax.lax.broadcasted_iota(jnp.int32, (num_classes, labels.shape[-1]), 0)
    onehot = (iota == labels).astype(jnp.float32)               # (C, TT)
    gathered = jnp.dot(prob_ref[...], onehot,
                       preferred_element_type=jnp.float32)      # (TN, TT)

    c_ref[...] = (cost_point_w * cost_point
                  - cost_class_w * gathered).astype(c_ref.dtype)


def _round_up(x, m):
    return ((x + m - 1) // m) * m


def _pick_tile(size, align, target):
    """Pad `size` only to a multiple of `align`; choose the largest tile that
    is a multiple of `align`, divides the padded size, and is <= target.
    No over-padding to the tile target -> no phantom rows/columns."""
    padded = _round_up(max(int(size), 1), align)
    if padded <= target:
        return padded, padded
    units = padded // align
    max_units = max(target // align, 1)
    best = 1
    for d in range(1, max_units + 1):
        if units % d == 0:
            best = d
    return padded, best * align


def compute_cost_matrix(pred_coords, pred_logits, gt_points_padded,
                        gt_labels_padded, cost_point_w, cost_class_w,
                        out_dtype=jnp.float32):
    """Per-batch (block-diagonal) weighted cost matrices.

    pred_coords:       (bs, num_queries, 2)
    pred_logits:       (bs, num_queries, C)
    gt_points_padded:  (bs, T_max, 2)   zero-padded per batch
    gt_labels_padded:  (bs, T_max)      int, zero-padded per batch
    returns            (bs, num_queries, T_max)  (cols >= T_i are garbage,
                       sliced off by the caller)
    """
    bs, nq, _ = pred_coords.shape
    num_classes = pred_logits.shape[-1]
    t_max = int(gt_points_padded.shape[1])
    if t_max == 0:
        return jnp.zeros((bs, nq, 0), out_dtype)

    n_pad, tn = _pick_tile(nq, 8, 256)
    t_pad, tt = _pick_tile(t_max, 128, 2048)

    coords = pred_coords.astype(jnp.float32)                        # (bs, nq, 2)
    prob = jax.nn.softmax(pred_logits.astype(jnp.float32), axis=-1)  # (bs, nq, C)
    coords = jnp.pad(coords, ((0, 0), (0, n_pad - nq), (0, 0)))
    prob = jnp.pad(prob, ((0, 0), (0, n_pad - nq), (0, 0)))

    gt_xy = jnp.transpose(gt_points_padded.astype(jnp.float32), (0, 2, 1))  # (bs,2,T)
    gt_xy = jnp.pad(gt_xy, ((0, 0), (0, 0), (0, t_pad - t_max)))
    labels = gt_labels_padded.astype(jnp.int32)[:, None, :]                 # (bs,1,T)
    labels = jnp.pad(labels, ((0, 0), (0, 0), (0, t_pad - t_max)))

    kernel = functools.partial(_cost_kernel,
                               cost_point_w=float(cost_point_w),
                               cost_class_w=float(cost_class_w),
                               num_classes=num_classes)

    c = pl.pallas_call(
        kernel,
        out_shape=jax.ShapeDtypeStruct((bs, n_pad, t_pad), out_dtype),
        # T innermost: row inputs (coords, prob) keep their block index across
        # j and are not re-DMAed; per-column inputs are tiny ((2+1)*TT*4 B).
        grid=(bs, n_pad // tn, t_pad // tt),
        in_specs=[
            pl.BlockSpec((None, tn, 2), lambda b, i, j: (b, i, 0)),
            pl.BlockSpec((None, 2, tt), lambda b, i, j: (b, 0, j)),
            pl.BlockSpec((None, tn, num_classes), lambda b, i, j: (b, i, 0)),
            pl.BlockSpec((None, 1, tt), lambda b, i, j: (b, 0, j)),
        ],
        out_specs=pl.BlockSpec((None, tn, tt), lambda b, i, j: (b, i, j)),
        compiler_params=pltpu.CompilerParams(
            dimension_semantics=("parallel", "parallel", "arbitrary")),
    )(coords, gt_xy, prob, labels)

    # strip padding before anything downstream sees phantom rows/columns
    return c[:, :nq, :t_max]


def _linear_sum_assignment_np(cost):
    """Exact Hungarian algorithm (Jonker/e-maxx potentials), pure numpy
    fallback used only if SciPy is unavailable."""
    cost = np.asarray(cost, dtype=np.float64)
    transposed = False
    if cost.shape[0] > cost.shape[1]:
        cost = cost.T
        transposed = True
    n, m = cost.shape
    inf = np.inf
    u = np.zeros(n + 1)
    v = np.zeros(m + 1)
    p = np.zeros(m + 1, dtype=np.int64)
    way = np.zeros(m + 1, dtype=np.int64)
    for i in range(1, n + 1):
        p[0] = i
        j0 = 0
        minv = np.full(m + 1, inf)
        used = np.zeros(m + 1, dtype=bool)
        while True:
            used[j0] = True
            i0 = p[j0]
            delta = inf
            j1 = 0
            nu = ~used[1:]
            cur = cost[i0 - 1, :] - u[i0] - v[1:]
            upd = nu & (cur < minv[1:])
            minv[1:][upd] = cur[upd]
            way[1:][upd] = j0
            if nu.any():
                cand = np.where(nu, minv[1:], inf)
                j1 = int(np.argmin(cand)) + 1
                delta = cand[j1 - 1]
            u[p[used]] += delta
            v[used] -= delta
            minv[~used] -= delta
            j0 = j1
            if p[j0] == 0:
                break
        while j0 != 0:
            j1 = way[j0]
            p[j0] = p[j1]
            j0 = j1
    rows, cols = [], []
    for j in range(1, m + 1):
        if p[j] != 0:
            rows.append(p[j] - 1)
            cols.append(j - 1)
    rows = np.asarray(rows, dtype=np.int64)
    cols = np.asarray(cols, dtype=np.int64)
    if transposed:
        rows, cols = cols, rows
    order = np.argsort(rows)
    return rows[order], cols[order]


def _lsa(cost):
    if _scipy_lsa is not None:
        r, c = _scipy_lsa(np.asarray(cost, dtype=np.float64))
        return np.asarray(r, dtype=np.int64), np.asarray(c, dtype=np.int64)
    return _linear_sum_assignment_np(cost)


def hungarian_matcher(outputs, targets, *, cost_point=0.05, cost_class=1.0,
                      out_dtype=jnp.float32):
    """Mirrors HungarianMatcher.forward; returns ([(row_idx, col_idx)] per
    batch, per-batch block-diagonal cost matrix of shape (bs, nq, T_max))."""
    bs = outputs['pred_coords'].shape[0]
    num_queries = outputs['pred_coords'].shape[1]
    gt_nums = [int(x) for x in targets['gt_nums']]

    if sum(gt_nums) == 0:
        empty = np.zeros((0,), dtype=np.int64)
        c = np.zeros((bs, num_queries, 0), dtype=np.float32)
        return [(empty, empty) for _ in range(bs)], c

    # pack gt into padded per-batch layout (block-diagonal kernel input)
    t_max = max(gt_nums)
    gt_pts = jnp.zeros((bs, t_max, 2), jnp.float32)
    gt_lbls = jnp.zeros((bs, t_max), jnp.int32)
    for i in range(bs):
        ni = gt_nums[i]
        if ni > 0:
            gt_pts = gt_pts.at[i, :ni].set(
                targets['gt_points'][i].astype(jnp.float32))
            gt_lbls = gt_lbls.at[i, :ni].set(
                targets['gt_labels'][i].astype(jnp.int32))

    c = compute_cost_matrix(outputs['pred_coords'], outputs['pred_logits'],
                            gt_pts, gt_lbls, cost_point, cost_class,
                            out_dtype=out_dtype)
    c = np.asarray(jax.block_until_ready(c))   # (bs, num_queries, T_max)

    # TODO(synk): linear_sum_assignment is data-dependent sequential control
    # flow with no clean Pallas equivalent; it runs on the host.
    indices = []
    for i in range(bs):
        ni = gt_nums[i]
        row, col = _lsa(c[i, :, :ni])
        indices.append((row.astype(np.int64), col.astype(np.int64)))
    return indices, c


if __name__ == "__main__":
    key = jax.random.PRNGKey(0)
    bs, num_queries, num_classes = 2, 8, 4
    gt_nums = [3, 5]
    cost_point_w, cost_class_w = 0.05, 1.0

    k1, k2, k3, k4, k5, k6 = jax.random.split(key, 6)
    pred_coords = jax.random.uniform(k1, (bs, num_queries, 2), dtype=jnp.float32)
    pred_logits = jax.random.normal(k2, (bs, num_queries, num_classes),
                                    dtype=jnp.float32)
    gt_points = [
        jax.random.uniform(k3, (gt_nums[0], 2), dtype=jnp.float32),
        jax.random.uniform(k4, (gt_nums[1], 2), dtype=jnp.float32),
    ]
    gt_labels = [
        jax.random.randint(k5, (gt_nums[0],), 0, num_classes, dtype=jnp.int32),
        jax.random.randint(k6, (gt_nums[1],), 0, num_classes, dtype=jnp.int32),
    ]

    outputs = {'pred_coords': pred_coords, 'pred_logits': pred_logits}
    targets = {'gt_points': gt_points, 'gt_labels': gt_labels, 'gt_nums': gt_nums}

    indices, c_kernel = hungarian_matcher(
        outputs, targets, cost_point=cost_point_w, cost_class=cost_class_w)

    # ---- numpy f64 reference check of the Pallas per-batch cost blocks ----
    for i in range(bs):
        ni = gt_nums[i]
        coords_np = np.asarray(pred_coords[i]).astype(np.float64)       # (nq, 2)
        gts_np = np.asarray(gt_points[i]).astype(np.float64)            # (ni, 2)
        dist = np.sqrt(((coords_np[:, None, :] - gts_np[None, :, :]) ** 2).sum(-1))
        logits_np = np.asarray(pred_logits[i]).astype(np.float64)       # (nq, C)
        prob = np.exp(logits_np - logits_np.max(-1, keepdims=True))
        prob /= prob.sum(-1, keepdims=True)
        labels_np = np.asarray(gt_labels[i])
        cost_class_ref = -prob[:, labels_np]
        c_ref = cost_point_w * dist + cost_class_w * cost_class_ref
        assert np.allclose(c_kernel[i, :, :ni], c_ref, atol=1e-5), \
            f"cost matrix mismatch in batch {i}"

    # basic sanity on the assignment output format
    for (row, col), n_gt in zip(indices, gt_nums):
        assert row.shape == (n_gt,) and col.shape == (n_gt,)
        assert row.dtype == np.int64 and col.dtype == np.int64
        assert len(np.unique(row)) == n_gt and len(np.unique(col)) == n_gt

    print("KERNEL_OK")
</pallas_src>

<mosaic_0001>
module attributes {stable_mosaic.version = 11 : i64} {
  func.func @_cost_kernel(%arg0: i32, %arg1: i32, %arg2: i32, %arg3: memref<1x8x2xf32, #tpu.memory_space<vmem>>, %arg4: memref<1x2x128xf32, #tpu.memory_space<vmem>>, %arg5: memref<1x8x4xf32, #tpu.memory_space<vmem>>, %arg6: memref<1x1x128xi32, #tpu.memory_space<vmem>>, %arg7: memref<1x8x128xf32, #tpu.memory_space<vmem>>) attributes {dimension_semantics = [#tpu.dimension_semantics<parallel>, #tpu.dimension_semantics<parallel>, #tpu.dimension_semantics<arbitrary>], iteration_bounds = array<i64: 2, 1, 1>, scalar_prefetch = 0 : i64, scratch_operands = 0 : i64, tpu.core_type = #tpu.core_type<tc>, window_params = [{transform_indices = @transform_0, window_bounds = array<i64: 1, 8, 2>}, {transform_indices = @transform_1, window_bounds = array<i64: 1, 2, 128>}, {transform_indices = @transform_2, window_bounds = array<i64: 1, 8, 4>}, {transform_indices = @transform_3, window_bounds = array<i64: 1, 1, 128>}, {transform_indices = @transform_4, window_bounds = array<i64: 1, 8, 128>}]} {
    %c0 = arith.constant 0 : index
    %c0_0 = arith.constant 0 : index
    %c0_1 = arith.constant 0 : index
    %0 = vector.load %arg3[%c0, %c0_0, %c0_1] : memref<1x8x2xf32, #tpu.memory_space<vmem>>, vector<1x8x2xf32>
    %1 = vector.shape_cast %0 : vector<1x8x2xf32> to vector<8x2xf32>
    %c0_2 = arith.constant 0 : index
    %c0_3 = arith.constant 0 : index
    %c0_4 = arith.constant 0 : index
    %2 = vector.load %arg4[%c0_2, %c0_3, %c0_4] : memref<1x2x128xf32, #tpu.memory_space<vmem>>, vector<1x1x128xf32>
    %3 = vector.shape_cast %2 : vector<1x1x128xf32> to vector<1x128xf32>
    %c0_5 = arith.constant 0 : index
    %c1 = arith.constant 1 : index
    %c0_6 = arith.constant 0 : index
    %4 = vector.load %arg4[%c0_5, %c1, %c0_6] : memref<1x2x128xf32, #tpu.memory_space<vmem>>, vector<1x1x128xf32>
    %5 = vector.shape_cast %4 : vector<1x1x128xf32> to vector<1x128xf32>
    %6 = vector.extract_strided_slice %1 {offsets = [0, 0], sizes = [8, 1], strides = [1, 1]} : vector<8x2xf32> to vector<8x1xf32>
    %7 = vector.broadcast %6 : vector<8x1xf32> to vector<8x128xf32>
    %8 = vector.broadcast %3 : vector<1x128xf32> to vector<8x128xf32>
    %9 = arith.subf %7, %8 : vector<8x128xf32>
    %10 = vector.extract_strided_slice %1 {offsets = [0, 1], sizes = [8, 1], strides = [1, 1]} : vector<8x2xf32> to vector<8x1xf32>
    %11 = vector.broadcast %10 : vector<8x1xf32> to vector<8x128xf32>
    %12 = vector.broadcast %5 : vector<1x128xf32> to vector<8x128xf32>
    %13 = arith.subf %11, %12 : vector<8x128xf32>
    %14 = arith.mulf %9, %9 : vector<8x128xf32>
    %15 = arith.mulf %13, %13 : vector<8x128xf32>
    %16 = arith.addf %14, %15 : vector<8x128xf32>
    %17 = math.sqrt %16 : vector<8x128xf32>
    %c0_7 = arith.constant 0 : index
    %c0_8 = arith.constant 0 : index
    %c0_9 = arith.constant 0 : index
    %18 = vector.load %arg6[%c0_7, %c0_8, %c0_9] : memref<1x1x128xi32, #tpu.memory_space<vmem>>, vector<1x1x128xi32>
    %19 = vector.shape_cast %18 : vector<1x1x128xi32> to vector<1x128xi32>
    %20 = tpu.iota {dimensions = array<i32: 0>} : vector<4x128xi32>
    %21 = vector.broadcast %19 : vector<1x128xi32> to vector<4x128xi32>
    %22 = arith.cmpi eq, %20, %21 : vector<4x128xi32>
    %23 = arith.extui %22 : vector<4x128xi1> to vector<4x128xi32>
    %24 = arith.sitofp %23 : vector<4x128xi32> to vector<4x128xf32>
    %c0_10 = arith.constant 0 : index
    %c0_11 = arith.constant 0 : index
    %c0_12 = arith.constant 0 : index
    %25 = vector.load %arg5[%c0_10, %c0_11, %c0_12] : memref<1x8x4xf32, #tpu.memory_space<vmem>>, vector<1x8x4xf32>
    %26 = vector.shape_cast %25 : vector<1x8x4xf32> to vector<8x4xf32>
    %cst = arith.constant dense<0.000000e+00> : vector<8x128xf32>
    %27 = tpu.matmul %26, %24, %cst {dimension_numbers = #tpu.dot_dimension_numbers<[1], [0], [0], [1], [0, 0, 1, 1], [], []>} : vector<8x4xf32>, vector<4x128xf32>, vector<8x128xf32> -> vector<8x128xf32>
    %cst_13 = arith.constant 5.000000e-02 : f32
    %28 = vector.broadcast %cst_13 : f32 to vector<8x128xf32>
    %29 = arith.mulf %28, %17 : vector<8x128xf32>
    %cst_14 = arith.constant 1.000000e+00 : f32
    %30 = vector.broadcast %cst_14 : f32 to vector<8x128xf32>
    %31 = arith.mulf %30, %27 : vector<8x128xf32>
    %32 = arith.subf %29, %31 : vector<8x128xf32>
    %c0_15 = arith.constant 0 : index
    %c0_16 = arith.constant 0 : index
    %c0_17 = arith.constant 0 : index
    %33 = vector.load %arg7[%c0_15, %c0_16, %c0_17] : memref<1x8x128xf32, #tpu.memory_space<vmem>>, vector<1x8x128xf32>
    %34 = vector.shape_cast %33 : vector<1x8x128xf32> to vector<8x128xf32>
    %35 = vector.shape_cast %32 : vector<8x128xf32> to vector<1x8x128xf32>
    tpu.vector_store %arg7[%c0_15, %c0_16, %c0_17], %35 {strides = array<i32>} : memref<1x8x128xf32, #tpu.memory_space<vmem>>, vector<1x8x128xf32>,
    return
  }
  func.func @transform_0(%arg0: i32, %arg1: i32, %arg2: i32) -> (i32, i32, i32) {
    %c0_i32 = arith.constant 0 : i32
    %c0_i32_0 = arith.constant 0 : i32
    return %arg0, %arg1, %c0_i32 : i32, i32, i32
  }
  func.func @transform_1(%arg0: i32, %arg1: i32, %arg2: i32) -> (i32, i32, i32) {
    %c0_i32 = arith.constant 0 : i32
    %c0_i32_0 = arith.constant 0 : i32
    return %arg0, %c0_i32, %arg2 : i32, i32, i32
  }
  func.func @transform_2(%arg0: i32, %arg1: i32, %arg2: i32) -> (i32, i32, i32) {
    %c0_i32 = arith.constant 0 : i32
    %c0_i32_0 = arith.constant 0 : i32
    return %arg0, %arg1, %c0_i32 : i32, i32, i32
  }
  func.func @transform_3(%arg0: i32, %arg1: i32, %arg2: i32) -> (i32, i32, i32) {
    %c0_i32 = arith.constant 0 : i32
    %c0_i32_0 = arith.constant 0 : i32
    return %arg0, %c0_i32, %arg2 : i32, i32, i32
  }
  func.func @transform_4(%arg0: i32, %arg1: i32, %arg2: i32) -> (i32, i32, i32) {
    %c0_i32 = arith.constant 0 : i32
    return %arg0, %arg1, %arg2 : i32, i32, i32
  }
}

</mosaic_0001>

<llo_original>
// kernel: tpu_custom_call.1
$region0: #{tpu_custom_call.1}
  #allocation0 [shape = 'u32[]', space=smem, size = 0x4, offset = 0x4, fixed_abs, tag = 'smem constant byte address 0x4 - core index']
  #allocation1 [shape = 'u32[144,128]{1,0:T(1,128)}', space=vmem, size = 0x12000, scoped, tag = 'internal scratch']
  %s0 = inlined_call_operand.vmem [shape: f32[2,8,2], index: 0, kind: input, shape index: {}]
  %s1 = inlined_call_operand.vmem [shape: f32[2,2,128], index: 1, kind: input, shape index: {}]
  %s2 = inlined_call_operand.vmem [shape: f32[2,8,4], index: 2, kind: input, shape index: {}]
  %s3 = inlined_call_operand.vmem [shape: s32[2,1,128], index: 3, kind: input, shape index: {}]
  %s4 = inlined_call_operand.hbm [shape: f32[2,8,128], index: 4, kind: output, shape index: {}]
  %s5 = sld [smem:[#allocation0]]
  $region49: #{tpu_custom_call.1} parent=0
    _
  %s7 = ssub.s32 1, %s5
  %s8 = scalar_select 0, %s7, %s5
  $region1: #{tpu_custom_call.1} parent=0
    #allocation2 [shape = 'u8[8192]{0}', space=vmem, size = 0x2000, scoped, tag = 'output window, operand 0']
    #allocation3 [shape = 's32[2]{0}', space=sflag, size = 0x8, scoped, tag = 'scoped memory for tpu_custom_call.1']
    %9 = vsyncpa [#allocation3], 0
    %s10 = scalar_lea.sflag [#allocation3], 1
    %11 = vsyncpa %s10, 0
    loop: start=0, step=1, limit=4
    $region2: #{tpu_custom_call.1} parent=1 // loop_pre_header
      _
    $region3: #{tpu_custom_call.1} parent=1 // loop_header
      %s13 = sphi 0, %s17
      %p14 = scmp.ge.s32.totalorder %s13, 4
      %s20 = sphi 0, %s39
      %s21 = sphi 0, %s35
      %s22 = sphi 0, %s31
      %s23 = sphi 0, %s20
      %s24 = sphi 0, %s21
      %s25 = sphi 0, %s22
      %s26 = sphi 0, %s23
      %s27 = sphi 0, %s24
      %s28 = sphi 0, %s25
      %s44 = sphi 0, %s46
      %s47 = sphi 0, %s44
      %s48 = sphi 0, %s47
      %s64 = sphi 0, %s48
      %s72 = sphi 0, %s74
      %s75 = sphi 0, %s72
      %s76 = sphi 0, %s75
      %s92 = sphi 0, %s76
      %s100 = sphi 0, %s102
      %s103 = sphi 0, %s100
      %s104 = sphi 0, %s103
      %s120 = sphi 0, %s104
      %s128 = sphi 0, %s130
      %s131 = sphi 0, %s128
      %s132 = sphi 0, %s131
      %s148 = sphi 0, %s132
      %s158 = sphi 0, %s160
      %s161 = sphi 0, %s158
      %s162 = sphi 0, %s161
      %s178 = sphi 0, %s162
    $region4: #{tpu_custom_call.1} parent=1 // loop_header_branch
      %16 = sbr.rel (%p14) target = $region8
    $region5: #{tpu_custom_call.1} parent=1 // loop_body
      %s18 = ssub.s32 %s13, 1
      %s19 = ssub.s32 %s13, 2
      %s29 = sadd.s32 1, %s22
      %p30 = scmp.ge.s32.totalorder %s29, 1
      %s31 = scalar_select %p30, 0, %s29
      %s32 = sadd.s32 1, %s21
      %s33 = scalar_select %p30, %s32, %s21
      %p34 = scmp.ge.s32.totalorder %s33, 1
      %s35 = scalar_select %p34, 0, %s33
      %s36 = sadd.s32 1, %s20
      %s37 = scalar_select %p34, %s36, %s20
      %p38 = scmp.ge.s32.totalorder %s37, 2
      %s39 = scalar_select %p38, 0, %s37
      %s40 = ssub.s32 %s20, %s39
      %s41 = ssub.s32 %s21, %s35
      %s42 = sor.u32 %s40, %s41
      %p43 = scmp.eq.s32.totalorder %s42, 0
      %s45 = sadd.s32 %s44, 1
      %s46 = scalar_select %p43, %s44, %s45
      %p49 = pneg %p43
      %p50 = scmp.eq.s32.totalorder %s13, 1
      %p51 = por %p49, %p50
      %p52 = scmp.ne.s32.totalorder %s44, %s47
      %p53 = scmp.eq.s32.totalorder %s13, 0
      %p54 = por %p52, %p53
      %p55 = scmp.ne.s32.totalorder %s44, %s47
      %p56 = scmp.eq.s32.totalorder %s18, 1
      %p57 = por %p55, %p56
      %p58 = scmp.ne.s32.totalorder %s47, %s48
      %p59 = scmp.eq.s32.totalorder %s18, 0
      %p60 = por %p58, %p59
      %p61 = scmp.ne.s32.totalorder %s47, %s48
      %p62 = scmp.eq.s32.totalorder %s19, 1
      %p63 = por %p61, %p62
      %p65 = scmp.ne.s32.totalorder %s48, %s64
      %p66 = scmp.eq.s32.totalorder %s19, 0
      %p67 = por %p65, %p66
      %s68 = ssub.s32 %s20, %s39
      %s69 = ssub.s32 %s22, %s31
      %s70 = sor.u32 %s68, %s69
      %p71 = scmp.eq.s32.totalorder %s70, 0
      %s73 = sadd.s32 %s72, 1
      %s74 = scalar_select %p71, %s72, %s73
      %p77 = pneg %p71
      %p78 = scmp.eq.s32.totalorder %s13, 1
      %p79 = por %p77, %p78
      %p80 = scmp.ne.s32.totalorder %s72, %s75
      %p81 = scmp.eq.s32.totalorder %s13, 0
      %p82 = por %p80, %p81
      %p83 = scmp.ne.s32.totalorder %s72, %s75
      %p84 = scmp.eq.s32.totalorder %s18, 1
      %p85 = por %p83, %p84
      %p86 = scmp.ne.s32.totalorder %s75, %s76
      %p87 = scmp.eq.s32.totalorder %s18, 0
      %p88 = por %p86, %p87
      %p89 = scmp.ne.s32.totalorder %s75, %s76
      %p90 = scmp.eq.s32.totalorder %s19, 1
      %p91 = por %p89, %p90
      %p93 = scmp.ne.s32.totalorder %s76, %s92
      %p94 = scmp.eq.s32.totalorder %s19, 0
      %p95 = por %p93, %p94
      %s96 = ssub.s32 %s20, %s39
      %s97 = ssub.s32 %s21, %s35
      %s98 = sor.u32 %s96, %s97
      %p99 = scmp.eq.s32.totalorder %s98, 0
      %s101 = sadd.s32 %s100, 1
      %s102 = scalar_select %p99, %s100, %s101
      %p105 = pneg %p99
      %p106 = scmp.eq.s32.totalorder %s13, 1
      %p107 = por %p105, %p106
      %p108 = scmp.ne.s32.totalorder %s100, %s103
      %p109 = scmp.eq.s32.totalorder %s13, 0
      %p110 = por %p108, %p109
      %p111 = scmp.ne.s32.totalorder %s100, %s103
      %p112 = scmp.eq.s32.totalorder %s18, 1
      %p113 = por %p111, %p112
      %p114 = scmp.ne.s32.totalorder %s103, %s104
      %p115 = scmp.eq.s32.totalorder %s18, 0
      %p116 = por %p114, %p115
      %p117 = scmp.ne.s32.totalorder %s103, %s104
      %p118 = scmp.eq.s32.totalorder %s19, 1
      %p119 = por %p117, %p118
      %p121 = scmp.ne.s32.totalorder %s104, %s120
      %p122 = scmp.eq.s32.totalorder %s19, 0
      %p123 = por %p121, %p122
      %s124 = ssub.s32 %s20, %s39
      %s125 = ssub.s32 %s22, %s31
      %s126 = sor.u32 %s124, %s125
      %p127 = scmp.eq.s32.totalorder %s126, 0
      %s129 = sadd.s32 %s128, 1
      %s130 = scalar_select %p127, %s128, %s129
      %p133 = pneg %p127
      %p134 = scmp.eq.s32.totalorder %s13, 1
      %p135 = por %p133, %p134
      %p136 = scmp.ne.s32.totalorder %s128, %s131
      %p137 = scmp.eq.s32.totalorder %s13, 0
      %p138 = por %p136, %p137
      %p139 = scmp.ne.s32.totalorder %s128, %s131
      %p140 = scmp.eq.s32.totalorder %s18, 1
      %p141 = por %p139, %p140
      %p142 = scmp.ne.s32.totalorder %s131, %s132
      %p143 = scmp.eq.s32.totalorder %s18, 0
      %p144 = por %p142, %p143
      %p145 = scmp.ne.s32.totalorder %s131, %s132
      %p146 = scmp.eq.s32.totalorder %s19, 1
      %p147 = por %p145, %p146
      %p149 = scmp.ne.s32.totalorder %s132, %s148
      %p150 = scmp.eq.s32.totalorder %s19, 0
      %p151 = por %p149, %p150
      %s152 = ssub.s32 %s20, %s39
      %s153 = ssub.s32 %s21, %s35
      %s154 = sor.u32 %s152, %s153
      %s155 = ssub.s32 %s22, %s31
      %s156 = sor.u32 %s154, %s155
      %p157 = scmp.eq.s32.totalorder %s156, 0
      %s159 = sadd.s32 %s158, 1
      %s160 = scalar_select %p157, %s158, %s159
      %p163 = pneg %p157
      %p164 = scmp.eq.s32.totalorder %s13, 1
      %p165 = por %p163, %p164
      %p166 = scmp.ne.s32.totalorder %s158, %s161
      %p167 = scmp.eq.s32.totalorder %s13, 0
      %p168 = por %p166, %p167
      %p169 = scmp.ne.s32.totalorder %s158, %s161
      %p170 = scmp.eq.s32.totalorder %s18, 1
      %p171 = por %p169, %p170
      %p172 = scmp.ne.s32.totalorder %s161, %s162
      %p173 = scmp.eq.s32.totalorder %s18, 0
      %p174 = por %p172, %p173
      %p175 = scmp.ne.s32.totalorder %s161, %s162
      %p176 = scmp.eq.s32.totalorder %s19, 1
      %p177 = por %p175, %p176
      %p179 = scmp.ne.s32.totalorder %s162, %s178
      %p180 = scmp.eq.s32.totalorder %s19, 0
      %p181 = por %p179, %p180
      %p182 = scmp.le.s32.totalorder 1, %s13
      %p183 = scmp.lt.s32.totalorder %s13, 3
      %p184 = pnand %p182, %p183
      %p185 = pneg %p184
      // Predicated region
      $region9: #{tpu_custom_call.1} parent=5 // pred_check
        _
      $region10: #{tpu_custom_call.1} parent=5 // pred_check_branch
        %187 = sbr.rel (%p184) target = $region12
      $region11: #{tpu_custom_call.1} parent=5 // pred_region
        %s188 = ssub.s32 %s13, 1
      $region12: #{tpu_custom_call.1} parent=5 // pred_fallthru
        _
      %p189 = scmp.lt.s32.totalorder %s13, 2
      // Predicated region
      $region13: #{tpu_custom_call.1} parent=5 // pred_check
        %p190 = pneg %p189
      $region14: #{tpu_custom_call.1} parent=5 // pred_check_branch
        %192 = sbr.rel (%p190) target = $region16
      $region15: #{tpu_custom_call.1} parent=5 // pred_region
        // Predicated region
        $region17: #{tpu_custom_call.1} parent=15 // pred_check
          %p193 = pneg %p54
        $region18: #{tpu_custom_call.1} parent=15 // pred_check_branch
          %195 = sbr.rel (%p193) target = $region20
        $region19: #{tpu_custom_call.1} parent=15 // pred_region
          %p196 = scmp.lt.s32.totalorder %s20, 1
          %s197 = scalar_select %p196, %s20, 1
          %p198 = scmp.lt.s32.totalorder %s21, 0
          %s199 = scalar_select %p198, %s21, 0
          %s200 = sadd.s32 %s199, %s197
          %s201 = smul.addr %s200, 8
          %s202 = scalar_lea.vmem %s0, %s201
        $region20: #{tpu_custom_call.1} parent=15 // pred_fallthru
          _
        // Predicated region
        $region21: #{tpu_custom_call.1} parent=15 // pred_check
          %p203 = pneg %p82
        $region22: #{tpu_custom_call.1} parent=15 // pred_check_branch
          %205 = sbr.rel (%p203) target = $region24
        $region23: #{tpu_custom_call.1} parent=15 // pred_region
          %p206 = scmp.lt.s32.totalorder %s20, 1
          %s207 = scalar_select %p206, %s20, 1
          %p208 = scmp.lt.s32.totalorder %s22, 0
          %s209 = scalar_select %p208, %s22, 0
          %s210 = sadd.s32 %s209, %s207
          %s211 = smul.addr %s210, 2
          %s212 = scalar_lea.vmem %s1, %s211
        $region24: #{tpu_custom_call.1} parent=15 // pred_fallthru
          _
        // Predicated region
        $region25: #{tpu_custom_call.1} parent=15 // pred_check
          %p213 = pneg %p110
        $region26: #{tpu_custom_call.1} parent=15 // pred_check_branch
          %215 = sbr.rel (%p213) target = $region28
        $region27: #{tpu_custom_call.1} parent=15 // pred_region
          %p216 = scmp.lt.s32.totalorder %s20, 1
          %s217 = scalar_select %p216, %s20, 1
          %p218 = scmp.lt.s32.totalorder %s21, 0
          %s219 = scalar_select %p218, %s21, 0
          %s220 = sadd.s32 %s219, %s217
          %s221 = smul.addr %s220, 8
          %s222 = scalar_lea.vmem %s2, %s221
        $region28: #{tpu_custom_call.1} parent=15 // pred_fallthru
          _
        // Predicated region
        $region29: #{tpu_custom_call.1} parent=15 // pred_check
          %p223 = pneg %p138
        $region30: #{tpu_custom_call.1} parent=15 // pred_check_branch
          %225 = sbr.rel (%p223) target = $region32
        $region31: #{tpu_custom_call.1} parent=15 // pred_region
          %p226 = scmp.lt.s32.totalorder %s20, 1
          %s227 = scalar_select %p226, %s20, 1
          %p228 = scmp.lt.s32.totalorder %s22, 0
          %s229 = scalar_select %p228, %s22, 0
          %s230 = sadd.s32 %s229, %s227
          %s231 = scalar_lea.vmem %s3, %s230
        $region32: #{tpu_custom_call.1} parent=15 // pred_fallthru
          _
      $region16: #{tpu_custom_call.1} parent=5 // pred_fallthru
        _
      %p232 = scmp.le.s32.totalorder 1, %s13
      %p233 = scmp.lt.s32.totalorder %s13, 3
      %p234 = pnand %p232, %p233
      %p235 = pneg %p234
      // Predicated region
      $region33: #{tpu_custom_call.1} parent=5 // pred_check
        _
      $region34: #{tpu_custom_call.1} parent=5 // pred_check_branch
        %237 = sbr.rel (%p234) target = $region36
      $region35: #{tpu_custom_call.1} parent=5 // pred_region
        %s238 = ssub.s32 %s13, 1
        %p239 = scmp.lt.s32.totalorder %s23, 1
        %s240 = scalar_select %p239, %s23, 1
        %p241 = scmp.lt.s32.totalorder %s24, 0
        %s242 = scalar_select %p241, %s24, 0
        %s243 = sadd.s32 %s242, %s240
        %s244 = smul.addr %s243, 8
        %s245 = scalar_lea.vmem %s0, %s244
        %p246 = pneg %p60
        %p247 = pneg %p57
        %p248 = scmp.lt.s32.totalorder %s23, 1
        %s249 = scalar_select %p248, %s23, 1
        %p250 = scmp.lt.s32.totalorder %s25, 0
        %s251 = scalar_select %p250, %s25, 0
        %s252 = sadd.s32 %s251, %s249
        %s253 = smul.addr %s252, 2
        %s254 = scalar_lea.vmem %s1, %s253
        %p255 = pneg %p88
        %p256 = pneg %p85
        %p257 = scmp.lt.s32.totalorder %s23, 1
        %s258 = scalar_select %p257, %s23, 1
        %p259 = scmp.lt.s32.totalorder %s24, 0
        %s260 = scalar_select %p259, %s24, 0
        %s261 = sadd.s32 %s260, %s258
        %s262 = smul.addr %s261, 8
        %s263 = scalar_lea.vmem %s2, %s262
        %p264 = pneg %p116
        %p265 = pneg %p113
        %p266 = scmp.lt.s32.totalorder %s23, 1
        %s267 = scalar_select %p266, %s23, 1
        %p268 = scmp.lt.s32.totalorder %s25, 0
        %s269 = scalar_select %p268, %s25, 0
        %s270 = sadd.s32 %s269, %s267
        %s271 = scalar_lea.vmem %s3, %s270
        %p272 = pneg %p144
        %p273 = pneg %p141
        %p274 = pneg %p174
        %p275 = pneg %p171
        %s276 = sand.u32 %s161, 1
        %s277 = scalar_lea.sflag [#allocation3], %s276
        %s278 = sand.u32 %s161, 1
        %s279 = smul.addr %s278, 8
        %s280 = scalar_lea.vmem [#allocation2], %s279
        %p281 = scmp.lt.s32.totalorder %s23, 1
        %s282 = scalar_select %p281, %s23, 1
        %p283 = scmp.lt.s32.totalorder %s24, 0
        %s284 = scalar_select %p283, %s24, 0
        %s285 = sadd.s32 %s284, %s282
        %s286 = smul.addr %s285, 8
        %s287 = scalar_lea.vmem %s0, %s286
        %p288 = scmp.lt.s32.totalorder %s23, 1
        %s289 = scalar_select %p288, %s23, 1
        %p290 = scmp.lt.s32.totalorder %s25, 0
        %s291 = scalar_select %p290, %s25, 0
        %s292 = sadd.s32 %s291, %s289
        %s293 = smul.addr %s292, 2
        %s294 = scalar_lea.vmem %s1, %s293
        %p295 = scmp.lt.s32.totalorder %s23, 1
        %s296 = scalar_select %p295, %s23, 1
        %p297 = scmp.lt.s32.totalorder %s24, 0
        %s298 = scalar_select %p297, %s24, 0
        %s299 = sadd.s32 %s298, %s296
        %s300 = smul.addr %s299, 8
        %s301 = scalar_lea.vmem %s2, %s300
        %p302 = scmp.lt.s32.totalorder %s23, 1
        %s303 = scalar_select %p302, %s23, 1
        %p304 = scmp.lt.s32.totalorder %s25, 0
        %s305 = scalar_select %p304, %s25, 0
        %s306 = sadd.s32 %s305, %s303
        %s307 = scalar_lea.vmem %s3, %s306
        %v308 = vld [vmem:[%s287] sm:$0xff]
        %v309 = vld [vmem:[%s294] sm:$0x1]
        %v310 = vld [vmem:[%s294 + $0x1] sm:$0x1]
        %312 = vset.pattern.permute.xlu0 0
        %313 = vperm.xlu0 %312, %v308
        %v314 = vpop.permute.xlu0 %313
        %v316 = vlaneseq
        %v317 = vshrl.u32 %v316, 7
        %v318 = vsub.s32 0, %v317
        %v319 = vrot.slane %v309, %v318
        %v320 = vsub.f32 %v314, %v319
        %321 = vset.pattern.permute.xlu0 1
        %322 = vperm.xlu0 %321, %v308
        %v323 = vpop.permute.xlu0 %322
        %v325 = vlaneseq
        %v326 = vshrl.u32 %v325, 7
        %v327 = vsub.s32 0, %v326
        %v328 = vrot.slane %v310, %v327
        %v329 = vsub.f32 %v323, %v328
        %v330 = vmul.f32 %v320, %v320
        %v331 = vmul.f32 %v329, %v329
        %v332 = vadd.f32 %v330, %v331
        %v333 = vrsqrt.pop %v332
        %v334 = vmul.f32 %v332, %v333
        %vm335 = vcmp.eq.f32.partialorder %v332, inf
        %v336 = vsel %vm335, %v332, %v334
        %vm337 = vcmp.eq.f32.partialorder %v332, 0.0
        %v338 = vand.u32 %v332, 2147483648
        %v339 = vsel %vm337, %v338, %v336
        %v340 = vld [vmem:[%s307] sm:$0x1]
        %v341 = vlaneseq
        %v342 = vshrl.u32 %v341, 7
        %v343 = vlaneseq
        %v344 = vshrl.u32 %v343, 7
        %v345 = vsub.s32 0, %v344
        %v346 = vrot.slane %v340, %v345
        %vm347 = vcmp.eq.s32.totalorder %v342, %v346
        %v348 = vsel %vm347, 1, 0
        %v349 = vcvt.s32.f32 %v348
        %v350 = vld [vmem:[%s301] sm:$0xff]
        %vm351 = vcmask 31744
        %v353 = vsel %vm351, %v350, 0
        %vm355 = vcmask 1043456
        %v357 = vsel %vm355, %v349, 0
        %359 = vmatprep.subr.mxu0 0.0
        %360 = vmatpush1.msra.mxu0 0.0
        %361 = vmatprep.subr.mxu0 0.0
        %362 = vmatpush1.msra.mxu0 0.0
        %363 = vmatprep.subr.mxu0 0.0
        %364 = vmatpush1.msra.mxu0 0.0
        %365 = vmatprep.subr.mxu0 0.0
        %366 = vmatpush1.msra.mxu0 0.0
        %367 = vmatprep.subr.mxu0 0.0
        %368 = vmatpush1.msra.mxu0 0.0
        %369 = vmatprep.subr.mxu0 0.0
        %370 = vmatpush1.msra.mxu0 0.0
        %371 = vmatprep.subr.mxu0 0.0
        %372 = vmatpush1.msra.mxu0 0.0
        %373 = vmatprep.subr.mxu0 0.0
        %374 = vmatpush1.msra.mxu0 0.0
        %375 = vmatprep.subr.mxu0 0.0
        %376 = vmatpush1.msra.mxu0 0.0
        %377 = vmatprep.subr.mxu0 0.0
        %378 = vmatpush1.msra.mxu0 0.0
        %379 = vmatprep.subr.mxu0 0.0
        %380 = vmatpush1.msra.mxu0 0.0
        %381 = vmatprep.subr.mxu0 0.0
        %382 = vmatpush1.msra.mxu0 0.0
        %383 = vmatprep.subr.mxu0 0.0
        %384 = vmatpush1.msra.mxu0 0.0
        %385 = vmatprep.subr.mxu0 0.0
        %386 = vmatpush1.msra.mxu0 0.0
        %387 = vmatprep.subr.mxu0 0.0
        %388 = vmatpush1.msra.mxu0 0.0
        %389 = vmatprep.subr.mxu0 0.0
        %390 = vmatpush1.msra.mxu0 %v357
        %391 = vmatprep.subr.mxu0 0.0
        %392 = vmatpush2.msra.mxu0 0.0
        %393 = vmatprep.subr.mxu0 0.0
        %394 = vmatpush2.msra.mxu0 0.0
        %395 = vmatprep.subr.mxu0 0.0
        %396 = vmatpush2.msra.mxu0 0.0
        %397 = vmatprep.subr.mxu0 0.0
        %398 = vmatpush2.msra.mxu0 0.0
        %399 = vmatprep.subr.mxu0 0.0
        %400 = vmatpush2.msra.mxu0 0.0
        %401 = vmatprep.subr.mxu0 0.0
        %402 = vmatpush2.msra.mxu0 0.0
        %403 = vmatprep.subr.mxu0 0.0
        %404 = vmatpush2.msra.mxu0 0.0
        %405 = vmatprep.subr.mxu0 0.0
        %406 = vmatpush2.msra.mxu0 0.0
        %407 = vmatprep.subr.mxu0 0.0
        %408 = vmatpush2.msra.mxu0 0.0
        %409 = vmatprep.subr.mxu0 0.0
        %410 = vmatpush2.msra.mxu0 0.0
        %411 = vmatprep.subr.mxu0 0.0
        %412 = vmatpush2.msra.mxu0 0.0
        %413 = vmatprep.subr.mxu0 0.0
        %414 = vmatpush2.msra.mxu0 0.0
        %415 = vmatprep.subr.mxu0 0.0
        %416 = vmatpush2.msra.mxu0 0.0
        %417 = vmatprep.subr.mxu0 0.0
        %418 = vmatpush2.msra.mxu0 0.0
        %419 = vmatprep.subr.mxu0 0.0
        %420 = vmatpush2.msra.mxu0 0.0
        %421 = vmatprep.subr.mxu0 0.0
        %422 = vmatpush2.msra.mxu0 0.0
        %423 = vmatprep.mubr.f32.mxu0 0.0
        %424 = vmatmul.mubr.f32.gmra.mxu0 %v353
        %v425 = vpop.f32.mrf.mxu0
        %v426 = vadd.f32 0.0, %v425
        %v427 = vpop.f32.mrf.mxu0
        %428 = vdwg.mxu0
        %v429 = vmul.f32 %v339, 0.05
        %v430 = vsub.f32 %v429, %v426
        %431 = vst [vmem:[%s280] sm:$0xff] %v430
        %s432 = sand.u32 %s161, 1
        %s433 = scalar_lea.sflag [#allocation3], %s432
        %s434 = sand.u32 %s161, 1
        %s435 = smul.addr %s434, 8
        %s436 = scalar_lea.vmem [#allocation2], %s435
        // Predicated region
        $region37: #{tpu_custom_call.1} parent=35 // pred_check
          %p437 = pneg %p171
        $region38: #{tpu_custom_call.1} parent=35 // pred_check_branch
          %439 = sbr.rel (%p437) target = $region40
        $region39: #{tpu_custom_call.1} parent=35 // pred_region
          %s441 = ssub.s32 128, 128
          %442 = vsyncadd %s433, %s441
          %s443 = sadd.s32 %s25, %s24
          %s444 = sadd.s32 %s443, %s23
          %s445 = smul.addr %s444, 128
          %s446 = scalar_lea.hbm %s4, %s445
          %s448 = sshll.u32 %s436, 4
          %s449 = int_to_ptr.vmem [resolvable:$true] %s448
          %451 = dma.vmem_to_hbm [thread:$0]  %s449, 128, %s446, %s433
        $region40: #{tpu_custom_call.1} parent=35 // pred_fallthru
          _
      $region36: #{tpu_custom_call.1} parent=5 // pred_fallthru
        _
      %p452 = scmp.le.s32.totalorder 2, %s13
      // Predicated region
      $region41: #{tpu_custom_call.1} parent=5 // pred_check
        %p453 = pneg %p452
      $region42: #{tpu_custom_call.1} parent=5 // pred_check_branch
        %455 = sbr.rel (%p453) target = $region44
      $region43: #{tpu_custom_call.1} parent=5 // pred_region
        %s456 = ssub.s32 %s13, 2
        // Predicated region
        $region45: #{tpu_custom_call.1} parent=43 // pred_check
          %p457 = pneg %p177
        $region46: #{tpu_custom_call.1} parent=43 // pred_check_branch
          %459 = sbr.rel (%p457) target = $region48
        $region47: #{tpu_custom_call.1} parent=43 // pred_region
          %s460 = sand.u32 %s162, 1
          %s461 = scalar_lea.sflag [#allocation3], %s460
          %s462 = sand.u32 %s162, 1
          %s463 = smul.addr %s462, 8
          %s464 = scalar_lea.vmem [#allocation2], %s463
          %465 = dma.done %s461, 128
        $region48: #{tpu_custom_call.1} parent=43 // pred_fallthru
          _
      $region44: #{tpu_custom_call.1} parent=5 // pred_fallthru
        _
    $region6: #{tpu_custom_call.1} parent=1 // loop_footer
      %s17 = sadd.s32 1, %s13
    $region7: #{tpu_custom_call.1} parent=1 // loop_footer_branch
      %12 = sbr.rel target = $region3
    $region8: #{tpu_custom_call.1} parent=1 // loop_exit
      _
    %466 = vsyncpa [#allocation3], 1
    %s467 = scalar_lea.sflag [#allocation3], 1
    %468 = vsyncpa %s467, 1

</llo_original>
